<compile_context>
chip_gen: v7x
topology: tpu7x:2x2x1
jax: 0.10.0
libtpu: 0.0.40
codegen_flags: <defaults>
</compile_context>

<pallas_src>
import math

import numpy as np

import jax
import jax.numpy as jnp
from jax.experimental import pallas as pl
from jax.experimental.pallas import tpu as pltpu

LUMINOSITY = (0.299, 0.587, 0.114)  # fixed buffer from the module's __init__

# Explicit scoped-VMEM budget: 32 MiB is safe on v5e (128 MiB phys, 16 MiB
# default), v6e (128 MiB) and v7x (64 MiB).  Re-derive together with tile sizes
# if tiles are enlarged.
VMEM_LIMIT_BYTES = 32 * 1024 * 1024


# ----------------------------------------------------------------------------
# Host-side glue: interpolation matrices with the quincunx ops pre-composed
# ----------------------------------------------------------------------------
def bilinear_matrix(in_size: int, out_size: int) -> np.ndarray:
    """1-D interpolation matrix reproducing torch interpolate(mode='bilinear',
    align_corners=False, antialias=False) for upsampling along one axis.
    (The module calls interpolate with scale_factor >= 1, i.e. it ENLARGES,
    and output size = floor(in * scale) exactly as torch computes it, even for
    8**(1/3) = 1.999999... -> 31 for H=16.)"""
    m = np.zeros((out_size, in_size), dtype=np.float32)
    ratio = in_size / out_size
    for dst in range(out_size):
        src = max((dst + 0.5) * ratio - 0.5, 0.0)
        i0 = min(int(math.floor(src)), in_size - 1)
        i1 = min(i0 + 1, in_size - 1)
        w1 = src - i0
        m[dst, i0] += 1.0 - w1
        m[dst, i1] += w1
    return m


def quincunx_factors(in_h, out_h, in_w, out_w):
    """Pre-compose the linear quincunx 2x2 window with the bilinear matrices so
    that, for an image x of shape (in_h, in_w):
        dx  = Ap @ x @ Bd.T   == 0.5 *(p01 + p11 - p00 - p10) of upsample(x)
        dy  = Ad @ x @ Bp.T   == 0.5 *(p10 + p11 - p00 - p01)
        avg = Ap @ x @ Bp.T   == 0.25*(p00 + p01 + p10 + p11)
    all of shape (out_h - 1, out_w - 1)."""
    A = bilinear_matrix(in_h, out_h)          # (out_h, in_h)
    B = bilinear_matrix(in_w, out_w)          # (out_w, in_w)
    Ap = 0.5 * (A[:-1] + A[1:])               # row pair-average (carries 0.5)
    Ad = A[1:] - A[:-1]                       # row difference
    Bp = 0.5 * (B[:-1] + B[1:])               # col pair-average (carries 0.5)
    Bd = B[1:] - B[:-1]                       # col difference
    return Ap, Ad, Bp, Bd


def stack_row_tiles(mat, tile_rows, num_tiles):
    """(rows, cols) -> (num_tiles, tile_rows, cols), zero-padded.  Zero rows of
    Ap/Ad produce zero rows of ddx/ddy/tavg and contribute exactly 0 to the
    loss sum, so no in-kernel masking is needed."""
    rows, cols = mat.shape
    padded = np.zeros((num_tiles * tile_rows, cols), dtype=np.float32)
    padded[:rows] = mat
    return padded.reshape(num_tiles, tile_rows, cols)


# ----------------------------------------------------------------------------
# Kernel 1: luminosity = sum_c image[:, c] * w[c]   -> bf16 (N, H, W)
# ----------------------------------------------------------------------------
def make_luminosity_call(N, C, H, W, tile_h):
    w0, w1, w2 = (float(v) for v in LUMINOSITY)
    num_row_tiles = pl.cdiv(H, tile_h)

    def kernel(x_ref, o_ref):
        x = x_ref[0]                                     # (C, tile_h, W) f32
        lum = x[0] * w0 + x[1] * w1 + x[2] * w2          # (tile_h, W) f32
        o_ref[...] = lum[None, :, :].astype(jnp.bfloat16)

    return pl.pallas_call(
        kernel,
        out_shape=jax.ShapeDtypeStruct((N, H, W), jnp.bfloat16),
        grid_spec=pltpu.PrefetchScalarGridSpec(
            num_scalar_prefetch=0,
            grid=(N, num_row_tiles),
            in_specs=[pl.BlockSpec((1, C, tile_h, W), lambda n, r: (n, 0, r, 0))],
            out_specs=pl.BlockSpec((1, tile_h, W), lambda n, r: (n, r, 0)),
        ),
        compiler_params=pltpu.CompilerParams(
            dimension_semantics=("parallel", "parallel"),
            vmem_limit_bytes=VMEM_LIMIT_BYTES,
        ),
    )


# ----------------------------------------------------------------------------
# Kernel 2: per-scale partial losses (one (batch, row-tile) partial per step)
# ----------------------------------------------------------------------------
def make_scale_loss_call(N, H, W, Wo, tile_rows, num_tiles):
    Wq = Wo - 1  # quincunx output width

    def kernel(inf_ref, tgt_ref, ap_ref, ad_ref, bdt_ref, bpt_ref, out_ref):
        d_img = inf_ref[0] - tgt_ref[0]     # (H, W)   bf16 difference image
        t_img = tgt_ref[0]                  # (H, W)   bf16
        ap = ap_ref[0]                      # (tile_rows, H) bf16
        ad = ad_ref[0]                      # (tile_rows, H) bf16
        bdt = bdt_ref[...]                  # (W, Wq)  bf16
        bpt = bpt_ref[...]                  # (W, Wq)  bf16

        # Row-direction matmuls (f32 MXU accumulation, bf16 operands).
        u_dx = jnp.dot(ap, d_img, preferred_element_type=jnp.float32)
        u_dy = jnp.dot(ad, d_img, preferred_element_type=jnp.float32)
        u_av = jnp.dot(ap, t_img, preferred_element_type=jnp.float32)

        # Column-direction matmuls; cast intermediates to bf16 to stay on the
        # fast MXU path while keeping f32 accumulation.
        ddx = jnp.dot(u_dx.astype(jnp.bfloat16), bdt,
                      preferred_element_type=jnp.float32)   # (tile_rows, Wq)
        ddy = jnp.dot(u_dy.astype(jnp.bfloat16), bpt,
                      preferred_element_type=jnp.float32)   # (tile_rows, Wq)
        tavg = jnp.dot(u_av.astype(jnp.bfloat16), bpt,
                       preferred_element_type=jnp.float32)  # (tile_rows, Wq)

        # EUP approximate reciprocal (frees the VPU slot); resp folded once.
        resp = pl.reciprocal(tavg + 1e-5, approx=True)
        partial = jnp.sum((jnp.abs(ddx) + jnp.abs(ddy)) * resp)

        # Lane-dense (8,128) output block per grid point -> unmasked stores,
        # fully parallel grid (no cross-step accumulator).
        out_ref[...] = jnp.broadcast_to(partial, (1, 1, 8, 128))

    return pl.pallas_call(
        kernel,
        out_shape=jax.ShapeDtypeStruct((N, num_tiles, 8, 128), jnp.float32),
        grid_spec=pltpu.PrefetchScalarGridSpec(
            num_scalar_prefetch=0,
            grid=(N, num_tiles),
            in_specs=[
                pl.BlockSpec((1, H, W), lambda n, t: (n, 0, 0)),
                pl.BlockSpec((1, H, W), lambda n, t: (n, 0, 0)),
                pl.BlockSpec((1, tile_rows, H), lambda n, t: (t, 0, 0)),
                pl.BlockSpec((1, tile_rows, H), lambda n, t: (t, 0, 0)),
                pl.BlockSpec((W, Wq), lambda n, t: (0, 0)),
                pl.BlockSpec((W, Wq), lambda n, t: (0, 0)),
            ],
            out_specs=pl.BlockSpec((1, 1, 8, 128), lambda n, t: (n, t, 0, 0)),
        ),
        compiler_params=pltpu.CompilerParams(
            dimension_semantics=("parallel", "parallel"),
            vmem_limit_bytes=VMEM_LIMIT_BYTES,
        ),
    )


# ----------------------------------------------------------------------------
# Wrapper: full MultiscalePerceptualLoss forward
# ----------------------------------------------------------------------------
def multiscale_perceptual_loss(inferred, target, max_downsample=8,
                               steps_to_downsample=4):
    N, C, H, W = inferred.shape
    assert C == 3, "luminosity weights expect 3 channels"
    assert target.shape == inferred.shape

    lum_tile_h = H if H <= 256 else 256
    lum_call = make_luminosity_call(N, C, H, W, lum_tile_h)
    inf_lum = lum_call(inferred.astype(jnp.float32))   # (N, H, W) bf16
    tgt_lum = lum_call(target.astype(jnp.float32))     # (N, H, W) bf16

    scales = [max_downsample ** (step / (steps_to_downsample - 1))
              for step in range(steps_to_downsample)]

    total = jnp.zeros((), jnp.float32)
    for s in scales:
        Ho = int(math.floor(H * s))
        Wo = int(math.floor(W * s))
        Ap, Ad, Bp, Bd = quincunx_factors(H, Ho, W, Wo)

        rows = Ho - 1                                   # quincunx output rows
        tile_rows = min(256, ((rows + 7) // 8) * 8)     # 8-aligned row tile
        num_tiles = -(-rows // tile_rows)

        ap_stack = jnp.asarray(stack_row_tiles(Ap, tile_rows, num_tiles),
                               dtype=jnp.bfloat16)      # (T, tile_rows, H)
        ad_stack = jnp.asarray(stack_row_tiles(Ad, tile_rows, num_tiles),
                               dtype=jnp.bfloat16)      # (T, tile_rows, H)
        bdt = jnp.asarray(Bd.T, dtype=jnp.bfloat16)     # (W, Wo-1)
        bpt = jnp.asarray(Bp.T, dtype=jnp.bfloat16)     # (W, Wo-1)

        loss_call = make_scale_loss_call(N, H, W, Wo, tile_rows, num_tiles)
        parts = loss_call(inf_lum, tgt_lum, ap_stack, ad_stack, bdt, bpt)
        # parts: (N, T, 8, 128), scalar partial broadcast per (batch, tile).
        total = total + jnp.sum(parts[:, :, 0, 0]) / float(N * (Ho - 1) * (Wo - 1))
    return total


# ----------------------------------------------------------------------------
# Pure-JAX f32 reference (same quincunx / interpolation-matrix semantics)
# ----------------------------------------------------------------------------
def reference_loss(inferred, target, max_downsample=8, steps_to_downsample=4):
    N, C, H, W = inferred.shape
    w = jnp.asarray(LUMINOSITY, jnp.float32).reshape(1, 3, 1, 1)
    inf_l = jnp.sum(inferred * w, axis=1)
    tgt_l = jnp.sum(target * w, axis=1)

    def quincunx(x):
        p00 = x[:, :-1, :-1]; p01 = x[:, :-1, 1:]
        p10 = x[:, 1:, :-1];  p11 = x[:, 1:, 1:]
        return (0.5 * (p01 + p11 - p00 - p10),
                0.5 * (p10 + p11 - p00 - p01),
                0.25 * (p00 + p01 + p10 + p11))

    scales = [max_downsample ** (step / (steps_to_downsample - 1))
              for step in range(steps_to_downsample)]
    total = jnp.zeros((), jnp.float32)
    for s in scales:
        Ho = int(math.floor(H * s)); Wo = int(math.floor(W * s))
        A = jnp.asarray(bilinear_matrix(H, Ho))
        Bt = jnp.asarray(bilinear_matrix(W, Wo).T)
        iu = jnp.einsum('oh,nhw,wp->nop', A, inf_l, Bt)
        tu = jnp.einsum('oh,nhw,wp->nop', A, tgt_l, Bt)
        idx, idy, _ = quincunx(iu)
        tdx, tdy, tavg = quincunx(tu)
        r = 1.0 / (tavg + 1e-5)
        total = total + jnp.mean(jnp.abs(idx * r - tdx * r)) \
                      + jnp.mean(jnp.abs(idy * r - tdy * r))
    return total


if __name__ == "__main__":
    key = jax.random.PRNGKey(0)
    k1, k2 = jax.random.split(key)
    inferred = jax.random.uniform(k1, (2, 3, 16, 16), dtype=jnp.float32)
    target = jax.random.uniform(k2, (2, 3, 16, 16), dtype=jnp.float32)

    out = multiscale_perceptual_loss(inferred, target)
    out = jax.block_until_ready(out)

    ref = jax.block_until_ready(reference_loss(inferred, target))
    # bf16 matmul operands + EUP approx reciprocal vs f32 reference.
    np.testing.assert_allclose(np.asarray(out), np.asarray(ref),
                               rtol=2e-2, atol=1e-3)
    print("KERNEL_OK")
</pallas_src>

<mosaic_0001>
module attributes {stable_mosaic.version = 11 : i64} {
  func.func @kernel(%arg0: i32, %arg1: i32, %arg2: memref<1x3x16x16xf32, #tpu.memory_space<vmem>>, %arg3: memref<1x16x16xbf16, #tpu.memory_space<vmem>>) attributes {dimension_semantics = [#tpu.dimension_semantics<parallel>, #tpu.dimension_semantics<parallel>], iteration_bounds = array<i64: 2, 1>, scalar_prefetch = 0 : i64, scratch_operands = 0 : i64, tpu.core_type = #tpu.core_type<tc>, window_params = [{transform_indices = @transform_0, window_bounds = array<i64: 1, 3, 16, 16>}, {transform_indices = @transform_1, window_bounds = array<i64: 1, 16, 16>}]} {
    %c0 = arith.constant 0 : index
    %c0_0 = arith.constant 0 : index
    %c0_1 = arith.constant 0 : index
    %c0_2 = arith.constant 0 : index
    %0 = vector.load %arg2[%c0, %c0_0, %c0_1, %c0_2] : memref<1x3x16x16xf32, #tpu.memory_space<vmem>>, vector<1x3x16x16xf32>
    %1 = vector.shape_cast %0 : vector<1x3x16x16xf32> to vector<3x16x16xf32>
    %2 = vector.extract_strided_slice %1 {offsets = [0, 0, 0], sizes = [1, 16, 16], strides = [1, 1, 1]} : vector<3x16x16xf32> to vector<1x16x16xf32>
    %3 = vector.shape_cast %2 : vector<1x16x16xf32> to vector<16x16xf32>
    %cst = arith.constant 2.990000e-01 : f32
    %4 = vector.broadcast %cst : f32 to vector<16x16xf32>
    %5 = arith.mulf %3, %4 : vector<16x16xf32>
    %6 = vector.extract_strided_slice %1 {offsets = [1, 0, 0], sizes = [1, 16, 16], strides = [1, 1, 1]} : vector<3x16x16xf32> to vector<1x16x16xf32>
    %7 = vector.shape_cast %6 : vector<1x16x16xf32> to vector<16x16xf32>
    %cst_3 = arith.constant 5.870000e-01 : f32
    %8 = vector.broadcast %cst_3 : f32 to vector<16x16xf32>
    %9 = arith.mulf %7, %8 : vector<16x16xf32>
    %10 = arith.addf %5, %9 : vector<16x16xf32>
    %11 = vector.extract_strided_slice %1 {offsets = [2, 0, 0], sizes = [1, 16, 16], strides = [1, 1, 1]} : vector<3x16x16xf32> to vector<1x16x16xf32>
    %12 = vector.shape_cast %11 : vector<1x16x16xf32> to vector<16x16xf32>
    %cst_4 = arith.constant 1.140000e-01 : f32
    %13 = vector.broadcast %cst_4 : f32 to vector<16x16xf32>
    %14 = arith.mulf %12, %13 : vector<16x16xf32>
    %15 = arith.addf %10, %14 : vector<16x16xf32>
    %16 = vector.shape_cast %15 : vector<16x16xf32> to vector<1x16x16xf32>
    %17 = arith.truncf %16 : vector<1x16x16xf32> to vector<1x16x16xbf16>
    %c0_5 = arith.constant 0 : index
    %c0_6 = arith.constant 0 : index
    %c0_7 = arith.constant 0 : index
    %18 = vector.load %arg3[%c0_5, %c0_6, %c0_7] : memref<1x16x16xbf16, #tpu.memory_space<vmem>>, vector<1x16x16xbf16>
    tpu.vector_store %arg3[%c0_5, %c0_6, %c0_7], %17 {strides = array<i32>} : memref<1x16x16xbf16, #tpu.memory_space<vmem>>, vector<1x16x16xbf16>,
    return
  }
  func.func @transform_0(%arg0: i32, %arg1: i32) -> (i32, i32, i32, i32) {
    %c0_i32 = arith.constant 0 : i32
    %c0_i32_0 = arith.constant 0 : i32
    %c0_i32_1 = arith.constant 0 : i32
    return %arg0, %c0_i32, %arg1, %c0_i32_0 : i32, i32, i32, i32
  }
  func.func @transform_1(%arg0: i32, %arg1: i32) -> (i32, i32, i32) {
    %c0_i32 = arith.constant 0 : i32
    %c0_i32_0 = arith.constant 0 : i32
    return %arg0, %arg1, %c0_i32 : i32, i32, i32
  }
}

</mosaic_0001>

<llo_original>
// kernel: tpu_custom_call.1
$region0: #{tpu_custom_call.1}
  #allocation0 [shape = 'u32[]', space=smem, size = 0x4, offset = 0x4, fixed_abs, tag = 'smem constant byte address 0x4 - core index']
  #allocation1 [shape = 'u32[144,128]{1,0:T(1,128)}', space=vmem, size = 0x12000, scoped, tag = 'internal scratch']
  %s0 = inlined_call_operand.hbm [shape: f32[2,3,16,16], index: 0, kind: input, shape index: {}]
  %s1 = inlined_call_operand.hbm [shape: bf16[2,16,16], index: 1, kind: output, shape index: {}]
  %s2 = sld [smem:[#allocation0]]
  $region41: #{tpu_custom_call.1} parent=0
    _
  %s4 = ssub.s32 1, %s2
  %s5 = scalar_select 0, %s4, %s2
  $region1: #{tpu_custom_call.1} parent=0
    #allocation2 [shape = 'u8[49152]{0}', space=vmem, size = 0xc000, scoped, tag = 'input window, operand 0']
    #allocation3 [shape = 's32[2]{0}', space=sflag, size = 0x8, scoped, tag = 'scoped memory for tpu_custom_call.1']
    #allocation4 [shape = 's32[2]{0}', space=sflag, size = 0x8, scoped, tag = 'scoped memory for tpu_custom_call.1']
    #allocation5 [shape = 'u8[8192]{0}', space=vmem, size = 0x2000, scoped, tag = 'output window, operand 0']
    %6 = vsyncpa [#allocation3], 0
    %s7 = scalar_lea.sflag [#allocation3], 1
    %8 = vsyncpa %s7, 0
    %9 = vsyncpa [#allocation4], 0
    %s10 = scalar_lea.sflag [#allocation4], 1
    %11 = vsyncpa %s10, 0
    loop: start=0, step=1, limit=4
    $region2: #{tpu_custom_call.1} parent=1 // loop_pre_header
      _
    $region3: #{tpu_custom_call.1} parent=1 // loop_header
      %s13 = sphi 0, %s17
      %p14 = scmp.ge.s32.totalorder %s13, 4
      %s20 = sphi 0, %s32
      %s21 = sphi 0, %s28
      %s22 = sphi 0, %s20
      %s23 = sphi 0, %s21
      %s24 = sphi 0, %s22
      %s25 = sphi 0, %s23
      %s37 = sphi 0, %s39
      %s40 = sphi 0, %s37
      %s41 = sphi 0, %s40
      %s57 = sphi 0, %s41
      %s65 = sphi 0, %s67
      %s68 = sphi 0, %s65
      %s69 = sphi 0, %s68
      %s85 = sphi 0, %s69
    $region4: #{tpu_custom_call.1} parent=1 // loop_header_branch
      %16 = sbr.rel (%p14) target = $region8
    $region5: #{tpu_custom_call.1} parent=1 // loop_body
      %s18 = ssub.s32 %s13, 1
      %s19 = ssub.s32 %s13, 2
      %s26 = sadd.s32 1, %s21
      %p27 = scmp.ge.s32.totalorder %s26, 1
      %s28 = scalar_select %p27, 0, %s26
      %s29 = sadd.s32 1, %s20
      %s30 = scalar_select %p27, %s29, %s20
      %p31 = scmp.ge.s32.totalorder %s30, 2
      %s32 = scalar_select %p31, 0, %s30
      %s33 = ssub.s32 %s20, %s32
      %s34 = ssub.s32 %s21, %s28
      %s35 = sor.u32 %s33, %s34
      %p36 = scmp.eq.s32.totalorder %s35, 0
      %s38 = sadd.s32 %s37, 1
      %s39 = scalar_select %p36, %s37, %s38
      %p42 = pneg %p36
      %p43 = scmp.eq.s32.totalorder %s13, 1
      %p44 = por %p42, %p43
      %p45 = scmp.ne.s32.totalorder %s37, %s40
      %p46 = scmp.eq.s32.totalorder %s13, 0
      %p47 = por %p45, %p46
      %p48 = scmp.ne.s32.totalorder %s37, %s40
      %p49 = scmp.eq.s32.totalorder %s18, 1
      %p50 = por %p48, %p49
      %p51 = scmp.ne.s32.totalorder %s40, %s41
      %p52 = scmp.eq.s32.totalorder %s18, 0
      %p53 = por %p51, %p52
      %p54 = scmp.ne.s32.totalorder %s40, %s41
      %p55 = scmp.eq.s32.totalorder %s19, 1
      %p56 = por %p54, %p55
      %p58 = scmp.ne.s32.totalorder %s41, %s57
      %p59 = scmp.eq.s32.totalorder %s19, 0
      %p60 = por %p58, %p59
      %s61 = ssub.s32 %s20, %s32
      %s62 = ssub.s32 %s21, %s28
      %s63 = sor.u32 %s61, %s62
      %p64 = scmp.eq.s32.totalorder %s63, 0
      %s66 = sadd.s32 %s65, 1
      %s67 = scalar_select %p64, %s65, %s66
      %p70 = pneg %p64
      %p71 = scmp.eq.s32.totalorder %s13, 1
      %p72 = por %p70, %p71
      %p73 = scmp.ne.s32.totalorder %s65, %s68
      %p74 = scmp.eq.s32.totalorder %s13, 0
      %p75 = por %p73, %p74
      %p76 = scmp.ne.s32.totalorder %s65, %s68
      %p77 = scmp.eq.s32.totalorder %s18, 1
      %p78 = por %p76, %p77
      %p79 = scmp.ne.s32.totalorder %s68, %s69
      %p80 = scmp.eq.s32.totalorder %s18, 0
      %p81 = por %p79, %p80
      %p82 = scmp.ne.s32.totalorder %s68, %s69
      %p83 = scmp.eq.s32.totalorder %s19, 1
      %p84 = por %p82, %p83
      %p86 = scmp.ne.s32.totalorder %s69, %s85
      %p87 = scmp.eq.s32.totalorder %s19, 0
      %p88 = por %p86, %p87
      %p89 = scmp.le.s32.totalorder 1, %s13
      %p90 = scmp.lt.s32.totalorder %s13, 3
      %p91 = pnand %p89, %p90
      %p92 = pneg %p91
      // Predicated region
      $region9: #{tpu_custom_call.1} parent=5 // pred_check
        _
      $region10: #{tpu_custom_call.1} parent=5 // pred_check_branch
        %94 = sbr.rel (%p91) target = $region12
      $region11: #{tpu_custom_call.1} parent=5 // pred_region
        %s95 = ssub.s32 %s13, 1
      $region12: #{tpu_custom_call.1} parent=5 // pred_fallthru
        _
      %p96 = scmp.lt.s32.totalorder %s13, 2
      // Predicated region
      $region13: #{tpu_custom_call.1} parent=5 // pred_check
        %p97 = pneg %p96
      $region14: #{tpu_custom_call.1} parent=5 // pred_check_branch
        %99 = sbr.rel (%p97) target = $region16
      $region15: #{tpu_custom_call.1} parent=5 // pred_region
        // Predicated region
        $region17: #{tpu_custom_call.1} parent=15 // pred_check
          %p100 = pneg %p47
        $region18: #{tpu_custom_call.1} parent=15 // pred_check_branch
          %102 = sbr.rel (%p100) target = $region20
        $region19: #{tpu_custom_call.1} parent=15 // pred_region
          %s103 = sand.u32 %s37, 1
          %s104 = scalar_lea.sflag [#allocation3], %s103
          %s105 = sand.u32 %s37, 1
          %s106 = smul.addr %s105, 48
          %s107 = scalar_lea.vmem [#allocation2], %s106
          %s108 = smul.u32 2, %s21
          %s110 = ssub.s32 768, 768
          %111 = vsyncadd %s104, %s110
          %s112 = smul.addr %s20, 6
          %s113 = sadd.s32 %s108, %s112
          %s114 = smul.addr %s113, 128
          %s115 = scalar_lea.hbm %s0, %s114
          %s116 = sshll.u32 %s107, 4
          %s117 = int_to_ptr.vmem [resolvable:$true] %s116
          %122 = dma.hbm_to_vmem [thread:$0]  %s115, 768, %s117, %s104, 128, 128, 8
        $region20: #{tpu_custom_call.1} parent=15 // pred_fallthru
          _
      $region16: #{tpu_custom_call.1} parent=5 // pred_fallthru
        _
      %p123 = scmp.le.s32.totalorder 1, %s13
      %p124 = scmp.lt.s32.totalorder %s13, 3
      %p125 = pnand %p123, %p124
      %p126 = pneg %p125
      // Predicated region
      $region21: #{tpu_custom_call.1} parent=5 // pred_check
        _
      $region22: #{tpu_custom_call.1} parent=5 // pred_check_branch
        %128 = sbr.rel (%p125) target = $region24
      $region23: #{tpu_custom_call.1} parent=5 // pred_region
        %s129 = ssub.s32 %s13, 1
        %s130 = sand.u32 %s40, 1
        %s131 = scalar_lea.sflag [#allocation3], %s130
        %s132 = sand.u32 %s40, 1
        %s133 = smul.addr %s132, 48
        %s134 = scalar_lea.vmem [#allocation2], %s133
        // Predicated region
        $region25: #{tpu_custom_call.1} parent=23 // pred_check
          %p135 = pneg %p53
        $region26: #{tpu_custom_call.1} parent=23 // pred_check_branch
          %137 = sbr.rel (%p135) target = $region28
        $region27: #{tpu_custom_call.1} parent=23 // pred_region
          %138 = dma.done %s131, 768
        $region28: #{tpu_custom_call.1} parent=23 // pred_fallthru
          _
        %s139 = sand.u32 %s40, 1
        %s140 = scalar_lea.sflag [#allocation3], %s139
        %s141 = sand.u32 %s40, 1
        %s142 = smul.addr %s141, 48
        %s143 = scalar_lea.vmem [#allocation2], %s142
        %p144 = pneg %p53
        %p145 = pneg %p50
        %p146 = pneg %p81
        %p147 = pneg %p78
        %s148 = sand.u32 %s68, 1
        %s149 = scalar_lea.sflag [#allocation4], %s148
        %s150 = sand.u32 %s68, 1
        %s151 = smul.addr %s150, 8
        %s152 = scalar_lea.vmem [#allocation5], %s151
        %s153 = smul.u32 2, %s23
        %s154 = smul.u32 2, %s23
        %v155 = vld [vmem:[%s134] sm:$0xff]
        %v156 = vld [vmem:[%s134 + $0x8] sm:$0xff]
        %v157 = vld [vmem:[%s134 + $0x10] sm:$0xff]
        %v158 = vld [vmem:[%s134 + $0x18] sm:$0xff]
        %v159 = vld [vmem:[%s134 + $0x20] sm:$0xff]
        %v160 = vld [vmem:[%s134 + $0x28] sm:$0xff]
        %v161 = vmul.f32 %v155, 0.299
        %v162 = vmul.f32 %v156, 0.299
        %v163 = vmul.f32 %v157, 0.587
        %v164 = vmul.f32 %v158, 0.587
        %v165 = vadd.f32 %v161, %v163
        %v166 = vadd.f32 %v162, %v164
        %v167 = vmul.f32 %v159, 0.114
        %v168 = vmul.f32 %v160, 0.114
        %v169 = vadd.f32 %v165, %v167
        %v170 = vadd.f32 %v166, %v168
        %v171 = vpack.c.bf16 %v170, %v169
        %v173 = vunpack.c.l.b16 %v171
        %v174 = vunpack.c.h.b16 %v171
        %v175 = vpack.c.b16 %v173, %v173
        %v176 = vpack.c.b16 %v174, %v174
        %vm179 = vcmask 125952
        %180 = vst.msk [vmem:[%s152] sm:$0xf] %vm179, %v175
        %181 = vst.msk [vmem:[%s152 + $0x4] sm:$0xf] %vm179, %v176
        %s182 = sand.u32 %s68, 1
        %s183 = scalar_lea.sflag [#allocation4], %s182
        %s184 = sand.u32 %s68, 1
        %s185 = smul.addr %s184, 8
        %s186 = scalar_lea.vmem [#allocation5], %s185
        // Predicated region
        $region29: #{tpu_custom_call.1} parent=23 // pred_check
          %p187 = pneg %p78
        $region30: #{tpu_custom_call.1} parent=23 // pred_check_branch
          %189 = sbr.rel (%p187) target = $region32
        $region31: #{tpu_custom_call.1} parent=23 // pred_region
          %s190 = smul.u32 2, %s23
          %s192 = ssub.s32 128, 128
          %193 = vsyncadd %s183, %s192
          %s194 = smul.addr %s22, 2
          %s195 = sadd.s32 %s190, %s194
          %s196 = smul.addr %s195, 64
          %s197 = scalar_lea.hbm %s1, %s196
          %s198 = sshll.u32 %s186, 4
          %s199 = int_to_ptr.vmem [resolvable:$true] %s198
          %204 = dma.vmem_to_hbm [thread:$0]  %s199, 128, %s197, %s183, 64, 64, 4
        $region32: #{tpu_custom_call.1} parent=23 // pred_fallthru
          _
      $region24: #{tpu_custom_call.1} parent=5 // pred_fallthru
        _
      %p205 = scmp.le.s32.totalorder 2, %s13
      // Predicated region
      $region33: #{tpu_custom_call.1} parent=5 // pred_check
        %p206 = pneg %p205
      $region34: #{tpu_custom_call.1} parent=5 // pred_check_branch
        %208 = sbr.rel (%p206) target = $region36
      $region35: #{tpu_custom_call.1} parent=5 // pred_region
        %s209 = ssub.s32 %s13, 2
        // Predicated region
        $region37: #{tpu_custom_call.1} parent=35 // pred_check
          %p210 = pneg %p84
        $region38: #{tpu_custom_call.1} parent=35 // pred_check_branch
          %212 = sbr.rel (%p210) target = $region40
        $region39: #{tpu_custom_call.1} parent=35 // pred_region
          %s213 = sand.u32 %s69, 1
          %s214 = scalar_lea.sflag [#allocation4], %s213
          %s215 = sand.u32 %s69, 1
          %s216 = smul.addr %s215, 8
          %s217 = scalar_lea.vmem [#allocation5], %s216
          %218 = dma.done %s214, 128
        $region40: #{tpu_custom_call.1} parent=35 // pred_fallthru
          _
      $region36: #{tpu_custom_call.1} parent=5 // pred_fallthru
        _
    $region6: #{tpu_custom_call.1} parent=1 // loop_footer
      %s17 = sadd.s32 1, %s13
    $region7: #{tpu_custom_call.1} parent=1 // loop_footer_branch
      %12 = sbr.rel target = $region3
    $region8: #{tpu_custom_call.1} parent=1 // loop_exit
      _
    %219 = vsyncpa [#allocation3], 1
    %s220 = scalar_lea.sflag [#allocation3], 1
    %221 = vsyncpa %s220, 1
    %222 = vsyncpa [#allocation4], 1
    %s223 = scalar_lea.sflag [#allocation4], 1
    %224 = vsyncpa %s223, 1

</llo_original>
